<compile_context>
chip_gen: v7x
topology: tpu7x:2x2x1
jax: 0.10.0
libtpu: 0.0.40
codegen_flags: <defaults>
</compile_context>

<pallas_src>
import math
from functools import partial

import jax
import jax.numpy as jnp
from jax.experimental import pallas as pl
from jax.experimental.pallas import tpu as pltpu


def _block_kernel(x_ref, w_ref, b_ref, g_ref, *rest, has_film):
    # x_ref:     (bb, L, 3*Cin)  bf16 im2col'd, channels-last, zero-padded taps
    # w_ref:     (3*Cin, Cout)   bf16 conv weight, taps stacked along K
    # b_ref:     (1, Cout)       f32 conv bias
    # g_ref:     (1, Cout)       f32 RMSNorm gain, already multiplied by sqrt(Cout)
    # [scale_ref, shift_ref]: (bb, 1, Cout) f32, scale already has +1 folded in
    # o_ref:     (bb, L, Cout)   f32 output
    if has_film:
        scale_ref, shift_ref, o_ref = rest
    else:
        (o_ref,) = rest
        scale_ref = shift_ref = None

    bb, L, K = x_ref.shape
    Cout = o_ref.shape[-1]

    # Conv1d(k=3, pad=1) as ONE MXU matmul: (bb*L, 3*Cin) @ (3*Cin, Cout), f32 accum.
    # The reshapes only merge/split leading (sublane) dims on 8-row boundaries.
    x2 = x_ref[...].reshape(bb * L, K)
    acc = jnp.dot(x2, w_ref[...], preferred_element_type=jnp.float32)
    acc = acc.reshape(bb, L, Cout) + b_ref[...]            # bias broadcast over (bb, L)

    # RMSNorm over the channel (lane) axis: F.normalize(x, dim=channel) * g * sqrt(Cout).
    # sqrt(Cout) is folded into g_ref; the 1e-24 clamp on sum-of-squares matches
    # F.normalize's 1e-12 clamp on the norm.
    ss = jnp.sum(acc * acc, axis=-1, keepdims=True)        # (bb, L, 1) cross-lane reduce
    inv = jax.lax.rsqrt(jnp.maximum(ss, 1e-24))            # EUP rsqrt
    y = acc * inv * g_ref[...]

    if has_film:
        # FiLM: x * (scale + 1) + shift; (scale + 1) precomputed in the wrapper.
        y = y * scale_ref[...] + shift_ref[...]

    # SiLU
    y = y * jax.nn.sigmoid(y)

    # TODO(synk): training-mode dropout (p > 0) would use pltpu.prng_seed + one bulk
    # pltpu.prng_random_bits draw per block; p = 0 / eval mode is the identity.
    o_ref[...] = y.astype(o_ref.dtype)


def block_forward(x, conv_weight, conv_bias, g, scale=None, shift=None):
    """Pallas implementation of Block.forward (eval mode / dropout p=0).

    x:           (B, Cin, L)   float32
    conv_weight: (Cout, Cin, 3)
    conv_bias:   (Cout,)
    g:           (Cout,)       RMSNorm gain (PyTorch stores it as (1, Cout, 1))
    scale/shift: optional (B, Cout), broadcast over L
    Returns:     (B, Cout, L)
    """
    B, Cin, L = x.shape
    Cout = conv_weight.shape[0]
    has_film = (scale is not None) and (shift is not None)

    # --- layout + constant folding, done once in the wrapper (fused by XLA) ---
    # channels-last, zero-pad L by 1 each side, im2col the 3 taps into K = 3*Cin.
    x_t = jnp.transpose(x, (0, 2, 1)).astype(jnp.float32)           # (B, L, Cin)
    x_pad = jnp.pad(x_t, ((0, 0), (1, 1), (0, 0)))                  # (B, L+2, Cin)
    x_col = jnp.concatenate(
        [x_pad[:, 0:L], x_pad[:, 1:L + 1], x_pad[:, 2:L + 2]], axis=-1
    ).astype(jnp.bfloat16)                                          # (B, L, 3*Cin)

    # (Cout, Cin, 3) -> (3, Cin, Cout) -> (3*Cin, Cout), same tap order as x_col.
    w = jnp.transpose(conv_weight, (2, 1, 0)).reshape(3 * Cin, Cout).astype(jnp.bfloat16)
    b2 = conv_bias.reshape(1, Cout).astype(jnp.float32)
    g_scaled = (g.reshape(1, Cout) * math.sqrt(Cout)).astype(jnp.float32)

    # Batches per grid step: enough that M = bb*L fills a 128-row MXU tile.
    # (At the test shape B=4, L=64 this gives bb=2 -> grid=(2,), so v7x's two
    # TensorCores both get a step while v5e/v6e see a cheap 2-iteration loop.)
    bb = max(1, min(B, pl.cdiv(128, L)))
    B_pad = pl.cdiv(B, bb) * bb
    if B_pad != B:
        x_col = jnp.pad(x_col, ((0, B_pad - B), (0, 0), (0, 0)))
    grid = (B_pad // bb,)

    in_specs = [
        pl.BlockSpec((bb, L, 3 * Cin), lambda i: (i, 0, 0)),
        pl.BlockSpec((3 * Cin, Cout), lambda i: (0, 0)),
        pl.BlockSpec((1, Cout), lambda i: (0, 0)),
        pl.BlockSpec((1, Cout), lambda i: (0, 0)),
    ]
    args = [x_col, w, b2, g_scaled]

    if has_film:
        scale_p1 = (scale.astype(jnp.float32) + 1.0).reshape(B, 1, Cout)
        shift3 = shift.astype(jnp.float32).reshape(B, 1, Cout)
        if B_pad != B:
            scale_p1 = jnp.pad(scale_p1, ((0, B_pad - B), (0, 0), (0, 0)))
            shift3 = jnp.pad(shift3, ((0, B_pad - B), (0, 0), (0, 0)))
        in_specs += [
            pl.BlockSpec((bb, 1, Cout), lambda i: (i, 0, 0)),
            pl.BlockSpec((bb, 1, Cout), lambda i: (i, 0, 0)),
        ]
        args += [scale_p1, shift3]

    out = pl.pallas_call(
        partial(_block_kernel, has_film=has_film),
        out_shape=jax.ShapeDtypeStruct((B_pad, L, Cout), jnp.float32),
        grid=grid,
        in_specs=in_specs,
        out_specs=pl.BlockSpec((bb, L, Cout), lambda i: (i, 0, 0)),
        compiler_params=pltpu.CompilerParams(dimension_semantics=("parallel",)),
    )(*args)

    out = out[:B]
    # Kept only to preserve the PyTorch (B, Cout, L) interface; drop it if the
    # surrounding model is channels-last.
    return jnp.transpose(out, (0, 2, 1))


def reference(x, conv_weight, conv_bias, g, scale, shift):
    """Plain-JAX (f32) replica of the PyTorch Block.forward (eval mode)."""
    y = jax.lax.conv_general_dilated(
        x, conv_weight, window_strides=(1,), padding=((1, 1),),
        dimension_numbers=("NCH", "OIH", "NCH"),
        precision=jax.lax.Precision.HIGHEST,
    )
    y = y + conv_bias[None, :, None]
    norm = jnp.sqrt(jnp.sum(y * y, axis=1, keepdims=True))
    y = y / jnp.maximum(norm, 1e-12) * g[None, :, None] * (y.shape[1] ** 0.5)
    y = y * (scale[:, :, None] + 1.0) + shift[:, :, None]
    return y * jax.nn.sigmoid(y)


if __name__ == "__main__":
    key = jax.random.PRNGKey(0)
    kx, kw, kb, ks, kh = jax.random.split(key, 5)

    batch, dim, dim_out, seq = 4, 32, 128, 64

    x = jax.random.normal(kx, (batch, dim, seq), dtype=jnp.float32)
    conv_weight = jax.random.normal(kw, (dim_out, dim, 3), dtype=jnp.float32) * 0.1
    conv_bias = jax.random.normal(kb, (dim_out,), dtype=jnp.float32) * 0.1
    g = jnp.ones((dim_out,), dtype=jnp.float32)          # RMSNorm gain init
    scale = jax.random.normal(ks, (batch, dim_out), dtype=jnp.float32) * 0.1
    shift = jax.random.normal(kh, (batch, dim_out), dtype=jnp.float32) * 0.1

    out = block_forward(x, conv_weight, conv_bias, g, scale, shift)
    out = jax.block_until_ready(out)

    ref = reference(x, conv_weight, conv_bias, g, scale, shift)
    assert out.shape == (batch, dim_out, seq), out.shape
    # bf16 matmul operands (f32 accumulation) -> loosened tolerance vs the f32 reference.
    assert jnp.allclose(out, ref, atol=3e-2, rtol=3e-2), "mismatch vs reference"

    # Also exercise the scale_shift=None (specialized) path.
    out2 = jax.block_until_ready(block_forward(x, conv_weight, conv_bias, g))
    ref2 = reference(x, conv_weight, conv_bias, g,
                     jnp.zeros((batch, dim_out)), jnp.zeros((batch, dim_out)))
    assert jnp.allclose(out2, ref2, atol=3e-2, rtol=3e-2), "mismatch (no scale_shift)"

    print("KERNEL_OK")
</pallas_src>

<mosaic_0001>
module attributes {stable_mosaic.version = 11 : i64} {
  func.func @_block_kernel(%arg0: i32, %arg1: memref<2x64x96xbf16, #tpu.memory_space<vmem>>, %arg2: memref<96x128xbf16, #tpu.memory_space<vmem>>, %arg3: memref<1x128xf32, #tpu.memory_space<vmem>>, %arg4: memref<1x128xf32, #tpu.memory_space<vmem>>, %arg5: memref<2x1x128xf32, #tpu.memory_space<vmem>>, %arg6: memref<2x1x128xf32, #tpu.memory_space<vmem>>, %arg7: memref<2x64x128xf32, #tpu.memory_space<vmem>>) attributes {dimension_semantics = [#tpu.dimension_semantics<parallel>], iteration_bounds = array<i64: 2>, scalar_prefetch = 0 : i64, scratch_operands = 0 : i64, tpu.core_type = #tpu.core_type<tc>, window_params = [{transform_indices = @transform_0, window_bounds = array<i64: 2, 64, 96>}, {pipeline_mode = #tpu.pipeline_mode<synchronous>, transform_indices = @transform_1, window_bounds = array<i64: 96, 128>}, {pipeline_mode = #tpu.pipeline_mode<synchronous>, transform_indices = @transform_2, window_bounds = array<i64: 1, 128>}, {pipeline_mode = #tpu.pipeline_mode<synchronous>, transform_indices = @transform_3, window_bounds = array<i64: 1, 128>}, {transform_indices = @transform_4, window_bounds = array<i64: 2, 1, 128>}, {transform_indices = @transform_5, window_bounds = array<i64: 2, 1, 128>}, {transform_indices = @transform_6, window_bounds = array<i64: 2, 64, 128>}]} {
    %c0 = arith.constant 0 : index
    %c0_0 = arith.constant 0 : index
    %c0_1 = arith.constant 0 : index
    %0 = vector.load %arg1[%c0, %c0_0, %c0_1] : memref<2x64x96xbf16, #tpu.memory_space<vmem>>, vector<2x64x96xbf16>
    %1 = vector.shape_cast %0 : vector<2x64x96xbf16> to vector<128x96xbf16>
    %c0_2 = arith.constant 0 : index
    %c0_3 = arith.constant 0 : index
    %2 = vector.load %arg2[%c0_2, %c0_3] : memref<96x128xbf16, #tpu.memory_space<vmem>>, vector<96x128xbf16>
    %cst = arith.constant dense<0.000000e+00> : vector<128x128xf32>
    %3 = tpu.matmul %1, %2, %cst {dimension_numbers = #tpu.dot_dimension_numbers<[1], [0], [0], [1], [0, 0, 1, 1], [], []>} : vector<128x96xbf16>, vector<96x128xbf16>, vector<128x128xf32> -> vector<128x128xf32>
    %4 = vector.shape_cast %3 : vector<128x128xf32> to vector<2x64x128xf32>
    %c0_4 = arith.constant 0 : index
    %c0_5 = arith.constant 0 : index
    %5 = vector.load %arg3[%c0_4, %c0_5] : memref<1x128xf32, #tpu.memory_space<vmem>>, vector<1x128xf32>
    %6 = vector.shape_cast %5 : vector<1x128xf32> to vector<1x1x128xf32>
    %7 = vector.broadcast %6 : vector<1x1x128xf32> to vector<2x64x128xf32>
    %8 = arith.addf %4, %7 : vector<2x64x128xf32>
    %9 = arith.mulf %8, %8 : vector<2x64x128xf32>
    %cst_6 = arith.constant dense<0.000000e+00> : vector<2x64xf32>
    %10 = vector.multi_reduction <add>, %9, %cst_6 [2] : vector<2x64x128xf32> to vector<2x64xf32>
    %11 = vector.shape_cast %10 : vector<2x64xf32> to vector<2x64x1xf32>
    %cst_7 = arith.constant 1.000000e-24 : f32
    %12 = vector.broadcast %cst_7 : f32 to vector<2x64x1xf32>
    %13 = arith.maximumf %11, %12 : vector<2x64x1xf32>
    %14 = math.rsqrt %13 : vector<2x64x1xf32>
    %15 = vector.broadcast %14 : vector<2x64x1xf32> to vector<2x64x128xf32>
    %16 = arith.mulf %8, %15 : vector<2x64x128xf32>
    %c0_8 = arith.constant 0 : index
    %c0_9 = arith.constant 0 : index
    %17 = vector.load %arg4[%c0_8, %c0_9] : memref<1x128xf32, #tpu.memory_space<vmem>>, vector<1x128xf32>
    %18 = vector.shape_cast %17 : vector<1x128xf32> to vector<1x1x128xf32>
    %19 = vector.broadcast %18 : vector<1x1x128xf32> to vector<2x64x128xf32>
    %20 = arith.mulf %16, %19 : vector<2x64x128xf32>
    %c0_10 = arith.constant 0 : index
    %c0_11 = arith.constant 0 : index
    %c0_12 = arith.constant 0 : index
    %21 = vector.load %arg5[%c0_10, %c0_11, %c0_12] : memref<2x1x128xf32, #tpu.memory_space<vmem>>, vector<2x1x128xf32>
    %22 = vector.broadcast %21 : vector<2x1x128xf32> to vector<2x64x128xf32>
    %23 = arith.mulf %20, %22 : vector<2x64x128xf32>
    %c0_13 = arith.constant 0 : index
    %c0_14 = arith.constant 0 : index
    %c0_15 = arith.constant 0 : index
    %24 = vector.load %arg6[%c0_13, %c0_14, %c0_15] : memref<2x1x128xf32, #tpu.memory_space<vmem>>, vector<2x1x128xf32>
    %25 = vector.broadcast %24 : vector<2x1x128xf32> to vector<2x64x128xf32>
    %26 = arith.addf %23, %25 : vector<2x64x128xf32>
    %27 = arith.negf %26 : vector<2x64x128xf32>
    %28 = math.exp %27 : vector<2x64x128xf32>
    %cst_16 = arith.constant 1.000000e+00 : f32
    %29 = vector.broadcast %cst_16 : f32 to vector<2x64x128xf32>
    %30 = arith.addf %29, %28 : vector<2x64x128xf32>
    %31 = arith.divf %29, %30 : vector<2x64x128xf32>
    %32 = arith.mulf %26, %31 : vector<2x64x128xf32>
    %c0_17 = arith.constant 0 : index
    %c0_18 = arith.constant 0 : index
    %c0_19 = arith.constant 0 : index
    %33 = vector.load %arg7[%c0_17, %c0_18, %c0_19] : memref<2x64x128xf32, #tpu.memory_space<vmem>>, vector<2x64x128xf32>
    tpu.vector_store %arg7[%c0_17, %c0_18, %c0_19], %32 {strides = array<i32>} : memref<2x64x128xf32, #tpu.memory_space<vmem>>, vector<2x64x128xf32>,
    return
  }
  func.func @transform_0(%arg0: i32) -> (i32, i32, i32) {
    %c0_i32 = arith.constant 0 : i32
    %c0_i32_0 = arith.constant 0 : i32
    %c0_i32_1 = arith.constant 0 : i32
    return %arg0, %c0_i32, %c0_i32_0 : i32, i32, i32
  }
  func.func @transform_1(%arg0: i32) -> (i32, i32) {
    %c0_i32 = arith.constant 0 : i32
    %c0_i32_0 = arith.constant 0 : i32
    %c0_i32_1 = arith.constant 0 : i32
    return %c0_i32, %c0_i32_0 : i32, i32
  }
  func.func @transform_2(%arg0: i32) -> (i32, i32) {
    %c0_i32 = arith.constant 0 : i32
    %c0_i32_0 = arith.constant 0 : i32
    %c0_i32_1 = arith.constant 0 : i32
    return %c0_i32, %c0_i32_0 : i32, i32
  }
  func.func @transform_3(%arg0: i32) -> (i32, i32) {
    %c0_i32 = arith.constant 0 : i32
    %c0_i32_0 = arith.constant 0 : i32
    %c0_i32_1 = arith.constant 0 : i32
    return %c0_i32, %c0_i32_0 : i32, i32
  }
  func.func @transform_4(%arg0: i32) -> (i32, i32, i32) {
    %c0_i32 = arith.constant 0 : i32
    %c0_i32_0 = arith.constant 0 : i32
    %c0_i32_1 = arith.constant 0 : i32
    return %arg0, %c0_i32, %c0_i32_0 : i32, i32, i32
  }
  func.func @transform_5(%arg0: i32) -> (i32, i32, i32) {
    %c0_i32 = arith.constant 0 : i32
    %c0_i32_0 = arith.constant 0 : i32
    %c0_i32_1 = arith.constant 0 : i32
    return %arg0, %c0_i32, %c0_i32_0 : i32, i32, i32
  }
  func.func @transform_6(%arg0: i32) -> (i32, i32, i32) {
    %c0_i32 = arith.constant 0 : i32
    %c0_i32_0 = arith.constant 0 : i32
    %c0_i32_1 = arith.constant 0 : i32
    return %arg0, %c0_i32, %c0_i32_0 : i32, i32, i32
  }
}

</mosaic_0001>

<llo_original>
// kernel: tpu_custom_call.1
$region0: #{tpu_custom_call.1}
  #allocation0 [shape = 'u32[]', space=smem, size = 0x4, offset = 0x4, fixed_abs, tag = 'smem constant byte address 0x4 - core index']
  #allocation1 [shape = 'u32[144,128]{1,0:T(1,128)}', space=vmem, size = 0x12000, scoped, tag = 'internal scratch']
  %s0 = inlined_call_operand.hbm [shape: bf16[4,64,96], index: 0, kind: input, shape index: {}]
  %s1 = inlined_call_operand.hbm [shape: bf16[96,128], index: 1, kind: input, shape index: {}]
  %s2 = inlined_call_operand.vmem [shape: f32[1,128], index: 2, kind: input, shape index: {}]
  %s3 = inlined_call_operand.vmem [shape: f32[1,128], index: 3, kind: input, shape index: {}]
  %s4 = inlined_call_operand.vmem [shape: f32[4,1,128], index: 4, kind: input, shape index: {}]
  %s5 = inlined_call_operand.vmem [shape: f32[4,1,128], index: 5, kind: input, shape index: {}]
  %s6 = inlined_call_operand.hbm [shape: f32[4,64,128], index: 6, kind: output, shape index: {}]
  %s7 = sld [smem:[#allocation0]]
  $region65: #{tpu_custom_call.1} parent=0
    _
  %s9 = ssub.s32 1, %s7
  %s10 = scalar_select 0, %s9, %s7
  $region1: #{tpu_custom_call.1} parent=0
    #allocation2 [shape = 'u8[65536]{0}', space=vmem, size = 0x10000, scoped, tag = 'input window, operand 0']
    #allocation3 [shape = 's32[2]{0}', space=sflag, size = 0x8, scoped, tag = 'scoped memory for tpu_custom_call.1']
    #allocation4 [shape = 's32[2]{0}', space=sflag, size = 0x8, scoped, tag = 'scoped memory for tpu_custom_call.1']
    #allocation5 [shape = 'u8[24576]{0}', space=vmem, size = 0x6000, scoped, tag = 'input window, operand 1, single buffered']
    #allocation6 [shape = 's32[1]{0}', space=sflag, size = 0x4, scoped, tag = 'scoped memory for tpu_custom_call.1']
    #allocation7 [shape = 'u8[131072]{0}', space=vmem, size = 0x20000, scoped, tag = 'output window, operand 0']
    %11 = vsyncpa [#allocation3], 0
    %s12 = scalar_lea.sflag [#allocation3], 1
    %13 = vsyncpa %s12, 0
    %14 = vsyncpa [#allocation6], 0
    %15 = vsyncpa [#allocation4], 0
    %s16 = scalar_lea.sflag [#allocation4], 1
    %17 = vsyncpa %s16, 0
    loop: start=0, step=1, limit=4
    $region2: #{tpu_custom_call.1} parent=1 // loop_pre_header
      _
    $region3: #{tpu_custom_call.1} parent=1 // loop_header
      %s19 = sphi 0, %s23
      %p20 = scmp.ge.s32.totalorder %s19, 4
      %s29 = sphi 0, %s31
      %s32 = sphi 0, %s29
      %s33 = sphi 0, %s32
      %s49 = sphi 0, %s33
      %s53 = sphi 0, %s53
      %s55 = sphi 0, %s53
      %s56 = sphi 0, %s55
      %s70 = sphi 0, %s56
      %s74 = sphi 0, %s74
      %s76 = sphi 0, %s74
      %s77 = sphi 0, %s76
      %s91 = sphi 0, %s77
      %s95 = sphi 0, %s95
      %s97 = sphi 0, %s95
      %s98 = sphi 0, %s97
      %s112 = sphi 0, %s98
      %s118 = sphi 0, %s120
      %s121 = sphi 0, %s118
      %s122 = sphi 0, %s121
      %s138 = sphi 0, %s122
      %s144 = sphi 0, %s146
      %s147 = sphi 0, %s144
      %s148 = sphi 0, %s147
      %s164 = sphi 0, %s148
      %s170 = sphi 0, %s172
      %s173 = sphi 0, %s170
      %s174 = sphi 0, %s173
      %s190 = sphi 0, %s174
    $region4: #{tpu_custom_call.1} parent=1 // loop_header_branch
      %22 = sbr.rel (%p20) target = $region8
    $region5: #{tpu_custom_call.1} parent=1 // loop_body
      %s24 = ssub.s32 %s19, 1
      %s25 = ssub.s32 %s19, 2
      %s26 = sadd.s32 %s19, 1
      %s27 = ssub.s32 %s19, %s26
      %p28 = scmp.eq.s32.totalorder %s27, 0
      %s30 = sadd.s32 %s29, 1
      %s31 = scalar_select %p28, %s29, %s30
      %p34 = pneg %p28
      %p35 = scmp.eq.s32.totalorder %s19, 1
      %p36 = por %p34, %p35
      %p37 = scmp.ne.s32.totalorder %s29, %s32
      %p38 = scmp.eq.s32.totalorder %s19, 0
      %p39 = por %p37, %p38
      %p40 = scmp.ne.s32.totalorder %s29, %s32
      %p41 = scmp.eq.s32.totalorder %s24, 1
      %p42 = por %p40, %p41
      %p43 = scmp.ne.s32.totalorder %s32, %s33
      %p44 = scmp.eq.s32.totalorder %s24, 0
      %p45 = por %p43, %p44
      %p46 = scmp.ne.s32.totalorder %s32, %s33
      %p47 = scmp.eq.s32.totalorder %s25, 1
      %p48 = por %p46, %p47
      %p50 = scmp.ne.s32.totalorder %s33, %s49
      %p51 = scmp.eq.s32.totalorder %s25, 0
      %p52 = por %p50, %p51
      %s54 = sadd.s32 %s53, 1
      %p57 = scmp.eq.s32.totalorder %s19, 1
      %p58 = scmp.ne.s32.totalorder %s53, %s55
      %p59 = scmp.eq.s32.totalorder %s19, 0
      %p60 = por %p58, %p59
      %p61 = scmp.ne.s32.totalorder %s53, %s55
      %p62 = scmp.eq.s32.totalorder %s24, 1
      %p63 = por %p61, %p62
      %p64 = scmp.ne.s32.totalorder %s55, %s56
      %p65 = scmp.eq.s32.totalorder %s24, 0
      %p66 = por %p64, %p65
      %p67 = scmp.ne.s32.totalorder %s55, %s56
      %p68 = scmp.eq.s32.totalorder %s25, 1
      %p69 = por %p67, %p68
      %p71 = scmp.ne.s32.totalorder %s56, %s70
      %p72 = scmp.eq.s32.totalorder %s25, 0
      %p73 = por %p71, %p72
      %s75 = sadd.s32 %s74, 1
      %p78 = scmp.eq.s32.totalorder %s19, 1
      %p79 = scmp.ne.s32.totalorder %s74, %s76
      %p80 = scmp.eq.s32.totalorder %s19, 0
      %p81 = por %p79, %p80
      %p82 = scmp.ne.s32.totalorder %s74, %s76
      %p83 = scmp.eq.s32.totalorder %s24, 1
      %p84 = por %p82, %p83
      %p85 = scmp.ne.s32.totalorder %s76, %s77
      %p86 = scmp.eq.s32.totalorder %s24, 0
      %p87 = por %p85, %p86
      %p88 = scmp.ne.s32.totalorder %s76, %s77
      %p89 = scmp.eq.s32.totalorder %s25, 1
      %p90 = por %p88, %p89
      %p92 = scmp.ne.s32.totalorder %s77, %s91
      %p93 = scmp.eq.s32.totalorder %s25, 0
      %p94 = por %p92, %p93
      %s96 = sadd.s32 %s95, 1
      %p99 = scmp.eq.s32.totalorder %s19, 1
      %p100 = scmp.ne.s32.totalorder %s95, %s97
      %p101 = scmp.eq.s32.totalorder %s19, 0
      %p102 = por %p100, %p101
      %p103 = scmp.ne.s32.totalorder %s95, %s97
      %p104 = scmp.eq.s32.totalorder %s24, 1
      %p105 = por %p103, %p104
      %p106 = scmp.ne.s32.totalorder %s97, %s98
      %p107 = scmp.eq.s32.totalorder %s24, 0
      %p108 = por %p106, %p107
      %p109 = scmp.ne.s32.totalorder %s97, %s98
      %p110 = scmp.eq.s32.totalorder %s25, 1
      %p111 = por %p109, %p110
      %p113 = scmp.ne.s32.totalorder %s98, %s112
      %p114 = scmp.eq.s32.totalorder %s25, 0
      %p115 = por %p113, %p114
      %s116 = ssub.s32 %s19, %s26
      %p117 = scmp.eq.s32.totalorder %s116, 0
      %s119 = sadd.s32 %s118, 1
      %s120 = scalar_select %p117, %s118, %s119
      %p123 = pneg %p117
      %p124 = scmp.eq.s32.totalorder %s19, 1
      %p125 = por %p123, %p124
      %p126 = scmp.ne.s32.totalorder %s118, %s121
      %p127 = scmp.eq.s32.totalorder %s19, 0
      %p128 = por %p126, %p127
      %p129 = scmp.ne.s32.totalorder %s118, %s121
      %p130 = scmp.eq.s32.totalorder %s24, 1
      %p131 = por %p129, %p130
      %p132 = scmp.ne.s32.totalorder %s121, %s122
      %p133 = scmp.eq.s32.totalorder %s24, 0
      %p134 = por %p132, %p133
      %p135 = scmp.ne.s32.totalorder %s121, %s122
      %p136 = scmp.eq.s32.totalorder %s25, 1
      %p137 = por %p135, %p136
      %p139 = scmp.ne.s32.totalorder %s122, %s138
      %p140 = scmp.eq.s32.totalorder %s25, 0
      %p141 = por %p139, %p140
      %s142 = ssub.s32 %s19, %s26
      %p143 = scmp.eq.s32.totalorder %s142, 0
      %s145 = sadd.s32 %s144, 1
      %s146 = scalar_select %p143, %s144, %s145
      %p149 = pneg %p143
      %p150 = scmp.eq.s32.totalorder %s19, 1
      %p151 = por %p149, %p150
      %p152 = scmp.ne.s32.totalorder %s144, %s147
      %p153 = scmp.eq.s32.totalorder %s19, 0
      %p154 = por %p152, %p153
      %p155 = scmp.ne.s32.totalorder %s144, %s147
      %p156 = scmp.eq.s32.totalorder %s24, 1
      %p157 = por %p155, %p156
      %p158 = scmp.ne.s32.totalorder %s147, %s148
      %p159 = scmp.eq.s32.totalorder %s24, 0
      %p160 = por %p158, %p159
      %p161 = scmp.ne.s32.totalorder %s147, %s148
      %p162 = scmp.eq.s32.totalorder %s25, 1
      %p163 = por %p161, %p162
      %p165 = scmp.ne.s32.totalorder %s148, %s164
      %p166 = scmp.eq.s32.totalorder %s25, 0
      %p167 = por %p165, %p166
      %s168 = ssub.s32 %s19, %s26
      %p169 = scmp.eq.s32.totalorder %s168, 0
      %s171 = sadd.s32 %s170, 1
      %s172 = scalar_select %p169, %s170, %s171
      %p175 = pneg %p169
      %p176 = scmp.eq.s32.totalorder %s19, 1
      %p177 = por %p175, %p176
      %p178 = scmp.ne.s32.totalorder %s170, %s173
      %p179 = scmp.eq.s32.totalorder %s19, 0
      %p180 = por %p178, %p179
      %p181 = scmp.ne.s32.totalorder %s170, %s173
      %p182 = scmp.eq.s32.totalorder %s24, 1
      %p183 = por %p181, %p182
      %p184 = scmp.ne.s32.totalorder %s173, %s174
      %p185 = scmp.eq.s32.totalorder %s24, 0
      %p186 = por %p184, %p185
      %p187 = scmp.ne.s32.totalorder %s173, %s174
      %p188 = scmp.eq.s32.totalorder %s25, 1
      %p189 = por %p187, %p188
      %p191 = scmp.ne.s32.totalorder %s174, %s190
      %p192 = scmp.eq.s32.totalorder %s25, 0
      %p193 = por %p191, %p192
      %p194 = scmp.le.s32.totalorder 1, %s19
      %p195 = scmp.lt.s32.totalorder %s19, 3
      %p196 = pnand %p194, %p195
      %p197 = pneg %p196
      // Predicated region
      $region9: #{tpu_custom_call.1} parent=5 // pred_check
        _
      $region10: #{tpu_custom_call.1} parent=5 // pred_check_branch
        %199 = sbr.rel (%p196) target = $region12
      $region11: #{tpu_custom_call.1} parent=5 // pred_region
        %s200 = ssub.s32 %s19, 1
        // Predicated region
        $region13: #{tpu_custom_call.1} parent=11 // pred_check
          %p201 = pneg %p66
        $region14: #{tpu_custom_call.1} parent=11 // pred_check_branch
          %203 = sbr.rel (%p201) target = $region16
        $region15: #{tpu_custom_call.1} parent=11 // pred_region
          %s205 = ssub.s32 768, 768
          %206 = vsyncadd [#allocation6], %s205
          %s207 = sshll.u32 [#allocation5], 4
          %s208 = int_to_ptr.vmem [resolvable:$true] %s207
          %213 = dma.hbm_to_vmem [thread:$0]  %s1, 768, %s208, [#allocation6], 64, 64, 4
        $region16: #{tpu_custom_call.1} parent=11 // pred_fallthru
          _
        // Predicated region
        $region17: #{tpu_custom_call.1} parent=11 // pred_check
          %p214 = pneg %p87
        $region18: #{tpu_custom_call.1} parent=11 // pred_check_branch
          %216 = sbr.rel (%p214) target = $region20
        $region19: #{tpu_custom_call.1} parent=11 // pred_region
          _
        $region20: #{tpu_custom_call.1} parent=11 // pred_fallthru
          _
        // Predicated region
        $region21: #{tpu_custom_call.1} parent=11 // pred_check
          %p217 = pneg %p108
        $region22: #{tpu_custom_call.1} parent=11 // pred_check_branch
          %219 = sbr.rel (%p217) target = $region24
        $region23: #{tpu_custom_call.1} parent=11 // pred_region
          _
        $region24: #{tpu_custom_call.1} parent=11 // pred_fallthru
          _
      $region12: #{tpu_custom_call.1} parent=5 // pred_fallthru
        _
      %p220 = scmp.lt.s32.totalorder %s19, 2
      // Predicated region
      $region25: #{tpu_custom_call.1} parent=5 // pred_check
        %p221 = pneg %p220
      $region26: #{tpu_custom_call.1} parent=5 // pred_check_branch
        %223 = sbr.rel (%p221) target = $region28
      $region27: #{tpu_custom_call.1} parent=5 // pred_region
        // Predicated region
        $region29: #{tpu_custom_call.1} parent=27 // pred_check
          %p224 = pneg %p39
        $region30: #{tpu_custom_call.1} parent=27 // pred_check_branch
          %226 = sbr.rel (%p224) target = $region32
        $region31: #{tpu_custom_call.1} parent=27 // pred_region
          %s227 = sand.u32 %s29, 1
          %s228 = scalar_lea.sflag [#allocation3], %s227
          %s229 = sand.u32 %s29, 1
          %s230 = smul.addr %s229, 64
          %s231 = scalar_lea.vmem [#allocation2], %s230
          %s232 = smul.u32 2, %s19
          %s234 = ssub.s32 1024, 1024
          %235 = vsyncadd %s228, %s234
          %s236 = smul.addr %s232, 8
          %s237 = smul.addr %s236, 64
          %s238 = scalar_lea.hbm %s0, %s237
          %s239 = sshll.u32 %s231, 4
          %s240 = int_to_ptr.vmem [resolvable:$true] %s239
          %245 = dma.hbm_to_vmem [thread:$0]  %s238, 1024, %s240, %s228, 64, 64, 4
        $region32: #{tpu_custom_call.1} parent=27 // pred_fallthru
          _
        // Predicated region
        $region33: #{tpu_custom_call.1} parent=27 // pred_check
          %p246 = pneg %p128
        $region34: #{tpu_custom_call.1} parent=27 // pred_check_branch
          %248 = sbr.rel (%p246) target = $region36
        $region35: #{tpu_custom_call.1} parent=27 // pred_region
          %s249 = smul.u32 2, %s19
          %p250 = scmp.lt.s32.totalorder %s249, 3
          %s251 = scalar_select %p250, %s249, 3
          %s252 = scalar_lea.vmem %s4, %s251
          %s253 = smul.u32 2, %s19
        $region36: #{tpu_custom_call.1} parent=27 // pred_fallthru
          _
        // Predicated region
        $region37: #{tpu_custom_call.1} parent=27 // pred_check
          %p254 = pneg %p154
        $region38: #{tpu_custom_call.1} parent=27 // pred_check_branch
          %256 = sbr.rel (%p254) target = $region40
        $region39: #{tpu_custom_call.1} parent=27 // pred_region
          %s257 = smul.u32 2, %s19
          %p258 = scmp.lt.s32.totalorder %s257, 3
          %s259 = scalar_select %p258, %s257, 3
          %s260 = scalar_lea.vmem %s5, %s259
          %s261 = smul.u32 2, %s19
        $region40: #{tpu_custom_call.1} parent=27 // pred_fallthru
          _
      $region28: #{tpu_custom_call.1} parent=5 // pred_fallthru
        _
      %p262 = scmp.le.s32.totalorder 1, %s19
      %p263 = scmp.lt.s32.totalorder %s19, 3
      %p264 = pnand %p262, %p263
      %p265 = pneg %p264
      // Predicated region
      $region41: #{tpu_custom_call.1} parent=5 // pred_check
        _
      $region42: #{tpu_custom_call.1} parent=5 // pred_check_branch
        %267 = sbr.rel (%p264) target = $region44
      $region43: #{tpu_custom_call.1} parent=5 // pred_region
        %s268 = ssub.s32 %s19, 1
        %s269 = sand.u32 %s32, 1
        %s270 = scalar_lea.sflag [#allocation3], %s269
        %s271 = sand.u32 %s32, 1
        %s272 = smul.addr %s271, 64
        %s273 = scalar_lea.vmem [#allocation2], %s272
        // Predicated region
        $region45: #{tpu_custom_call.1} parent=43 // pred_check
          %p274 = pneg %p45
        $region46: #{tpu_custom_call.1} parent=43 // pred_check_branch
          %276 = sbr.rel (%p274) target = $region48
        $region47: #{tpu_custom_call.1} parent=43 // pred_region
          %277 = dma.done %s270, 1024
        $region48: #{tpu_custom_call.1} parent=43 // pred_fallthru
          _
        // Predicated region
        $region49: #{tpu_custom_call.1} parent=43 // pred_check
          %p278 = pneg %p66
        $region50: #{tpu_custom_call.1} parent=43 // pred_check_branch
          %280 = sbr.rel (%p278) target = $region52
        $region51: #{tpu_custom_call.1} parent=43 // pred_region
          %281 = dma.done [#allocation6], 768
        $region52: #{tpu_custom_call.1} parent=43 // pred_fallthru
          _
        %s282 = sand.u32 %s32, 1
        %s283 = scalar_lea.sflag [#allocation3], %s282
        %s284 = sand.u32 %s32, 1
        %s285 = smul.addr %s284, 64
        %s286 = scalar_lea.vmem [#allocation2], %s285
        %p287 = pneg %p45
        %p288 = pneg %p42
        %p289 = pneg %p66
        %p290 = pneg %p63
        %p291 = pneg %p87
        %p292 = pneg %p84
        %p293 = pneg %p108
        %p294 = pneg %p105
        %s295 = smul.u32 2, %s24
        %p296 = scmp.lt.s32.totalorder %s295, 3
        %s297 = scalar_select %p296, %s295, 3
        %s298 = scalar_lea.vmem %s4, %s297
        %p299 = pneg %p134
        %p300 = pneg %p131
        %s301 = smul.u32 2, %s24
        %p302 = scmp.lt.s32.totalorder %s301, 3
        %s303 = scalar_select %p302, %s301, 3
        %s304 = scalar_lea.vmem %s5, %s303
        %p305 = pneg %p160
        %p306 = pneg %p157
        %p307 = pneg %p186
        %p308 = pneg %p183
        %s309 = sand.u32 %s173, 1
        %s310 = scalar_lea.sflag [#allocation4], %s309
        %s311 = sand.u32 %s173, 1
        %s312 = smul.addr %s311, 128
        %s313 = scalar_lea.vmem [#allocation7], %s312
        %s314 = smul.u32 2, %s24
        %s315 = smul.u32 2, %s24
        %p316 = scmp.lt.s32.totalorder %s315, 3
        %s317 = scalar_select %p316, %s315, 3
        %s318 = scalar_lea.vmem %s4, %s317
        %s319 = smul.u32 2, %s24
        %s320 = smul.u32 2, %s24
        %p321 = scmp.lt.s32.totalorder %s320, 3
        %s322 = scalar_select %p321, %s320, 3
        %s323 = scalar_lea.vmem %s5, %s322
        %s324 = smul.u32 2, %s24
        %s325 = smul.u32 2, %s24
        %v327 = vld [vmem:[%s273] sm:$0xf]
        %v328 = vld [vmem:[%s273 + $0x4] sm:$0xf]
        %v329 = vld [vmem:[%s273 + $0x8] sm:$0xf]
        %v330 = vld [vmem:[%s273 + $0xc] sm:$0xf]
        %v331 = vld [vmem:[%s273 + $0x10] sm:$0xf]
        %v332 = vld [vmem:[%s273 + $0x14] sm:$0xf]
        %v333 = vld [vmem:[%s273 + $0x18] sm:$0xf]
        %v334 = vld [vmem:[%s273 + $0x1c] sm:$0xf]
        %v335 = vld [vmem:[%s273 + $0x20] sm:$0xf]
        %v336 = vld [vmem:[%s273 + $0x24] sm:$0xf]
        %v337 = vld [vmem:[%s273 + $0x28] sm:$0xf]
        %v338 = vld [vmem:[%s273 + $0x2c] sm:$0xf]
        %v339 = vld [vmem:[%s273 + $0x30] sm:$0xf]
        %v340 = vld [vmem:[%s273 + $0x34] sm:$0xf]
        %v341 = vld [vmem:[%s273 + $0x38] sm:$0xf]
        %v342 = vld [vmem:[%s273 + $0x3c] sm:$0xf]
        %v343 = vld [vmem:[#allocation5] sm:$0xf]
        %v344 = vld [vmem:[#allocation5 + $0x4] sm:$0xf]
        %v345 = vld [vmem:[#allocation5 + $0x8] sm:$0xf]
        %v346 = vld [vmem:[#allocation5 + $0xc] sm:$0xf]
        %v347 = vld [vmem:[#allocation5 + $0x10] sm:$0xf]
        %v348 = vld [vmem:[#allocation5 + $0x14] sm:$0xf]
        %v349 = vld [vmem:[#allocation5 + $0x18] sm:$0xf]
        %v350 = vld [vmem:[#allocation5 + $0x1c] sm:$0xf]
        %v351 = vld [vmem:[#allocation5 + $0x20] sm:$0xf]
        %v352 = vld [vmem:[#allocation5 + $0x24] sm:$0xf]
        %v353 = vld [vmem:[#allocation5 + $0x28] sm:$0xf]
        %v354 = vld [vmem:[#allocation5 + $0x2c] sm:$0xf]
        %v371 = vunpack.c.l.b16 %v327
        %v372 = vunpack.c.l.b16 %v328
        %v373 = vunpack.c.l.b16 %v329
        %v374 = vunpack.c.l.b16 %v330
        %v375 = vunpack.c.l.b16 %v331
        %v376 = vunpack.c.l.b16 %v332
        %v377 = vunpack.c.l.b16 %v333
        %v378 = vunpack.c.l.b16 %v334
        %v379 = vunpack.c.l.b16 %v335
        %v380 = vunpack.c.l.b16 %v336
        %v381 = vunpack.c.l.b16 %v337
        %v382 = vunpack.c.l.b16 %v338
        %v383 = vunpack.c.l.b16 %v339
        %v384 = vunpack.c.l.b16 %v340
        %v385 = vunpack.c.l.b16 %v341
        %v386 = vunpack.c.l.b16 %v342
        %v387 = vpack.c.b16 %v372, %v371
        %v388 = vpack.c.b16 %v374, %v373
        %v389 = vpack.c.b16 %v376, %v375
        %v390 = vpack.c.b16 %v378, %v377
        %v391 = vpack.c.b16 %v380, %v379
        %v392 = vpack.c.b16 %v382, %v381
        %v393 = vpack.c.b16 %v384, %v383
        %v394 = vpack.c.b16 %v386, %v385
        %v407 = vunpack.c.l.b16 %v343
        %v408 = vunpack.c.l.b16 %v344
        %v409 = vunpack.c.l.b16 %v345
        %v410 = vunpack.c.l.b16 %v346
        %v411 = vunpack.c.l.b16 %v347
        %v412 = vunpack.c.l.b16 %v348
        %v413 = vunpack.c.l.b16 %v349
        %v414 = vunpack.c.l.b16 %v350
        %v415 = vunpack.c.l.b16 %v351
        %v416 = vunpack.c.l.b16 %v352
        %v417 = vunpack.c.l.b16 %v353
        %v418 = vunpack.c.l.b16 %v354
        %v419 = vpack.c.b16 %v408, %v407
        %v420 = vpack.c.b16 %v410, %v409
        %v421 = vpack.c.b16 %v412, %v411
        %v422 = vpack.c.b16 %v414, %v413
        %v423 = vpack.c.b16 %v416, %v415
        %v424 = vpack.c.b16 %v418, %v417
        %vm431 = vcmask 785408
        %v433 = vsel %vm431, %v387, 0
        %v436 = vsel %vm431, %v388, 0
        %v439 = vsel %vm431, %v389, 0
        %v442 = vsel %vm431, %v390, 0
        %v445 = vsel %vm431, %v391, 0
        %v448 = vsel %vm431, %v392, 0
        %v451 = vsel %vm431, %v393, 0
        %v454 = vsel %vm431, %v394, 0
        %456 = vmatprep.subr.bf16.mxu0 0
        %457 = vmatpush1.bf16.msra.mxu0 %v419
        %458 = vmatprep.subr.bf16.mxu0 0
        %459 = vmatpush1.bf16.msra.mxu0 %v420
        %460 = vmatprep.subr.bf16.mxu0 0
        %461 = vmatpush1.bf16.msra.mxu0 %v421
        %462 = vmatprep.subr.bf16.mxu0 0
        %463 = vmatpush1.bf16.msra.mxu0 %v422
        %464 = vmatprep.subr.bf16.mxu0 0
        %465 = vmatpush1.bf16.msra.mxu0 %v423
        %466 = vmatprep.subr.bf16.mxu0 0
        %467 = vmatpush1.bf16.msra.mxu0 %v424
        %468 = vmatprep.subr.bf16.mxu0 0
        %469 = vmatpush1.bf16.msra.mxu0 0
        %470 = vmatprep.subr.bf16.mxu0 0
        %471 = vmatpush1.bf16.msra.mxu0 0
        %472 = vmatprep.subr.bf16.mxu0 0
        %473 = vmatpush1.bf16.msra.mxu0 0
        %474 = vmatprep.subr.bf16.mxu0 0
        %475 = vmatpush1.bf16.msra.mxu0 0
        %476 = vmatprep.subr.bf16.mxu0 0
        %477 = vmatpush1.bf16.msra.mxu0 0
        %478 = vmatprep.subr.bf16.mxu0 0
        %479 = vmatpush1.bf16.msra.mxu0 0
        %480 = vmatprep.subr.bf16.mxu0 0
        %481 = vmatpush1.bf16.msra.mxu0 0
        %482 = vmatprep.subr.bf16.mxu0 0
        %483 = vmatpush1.bf16.msra.mxu0 0
        %484 = vmatprep.subr.bf16.mxu0 0
        %485 = vmatpush1.bf16.msra.mxu0 0
        %486 = vmatprep.subr.bf16.mxu0 0
        %487 = vmatpush1.bf16.msra.mxu0 0
        %488 = vmatprep.mubr.bf16.mxu0 0
        %489 = vmatmul.mubr.bf16.gmra.mrb[0].mxu0 %v433
        %v490 = vpop.f32.mrb[0].mxu0
        %v491 = vadd.f32 0.0, %v490
        %v492 = vpop.f32.mrb[0].mxu0
        %v493 = vpop.f32.mrb[0].mxu0
        %v494 = vadd.f32 0.0, %v493
        %v495 = vpop.f32.mrb[0].mxu0
        %496 = vmatprep.mubr.bf16.mxu0 0
        %497 = vmatmul.mubr.bf16.gmra.mrb[0].mxu0 %v436
        %v498 = vpop.f32.mrb[0].mxu0
        %v499 = vadd.f32 0.0, %v498
        %v500 = vpop.f32.mrb[0].mxu0
        %v501 = vpop.f32.mrb[0].mxu0
        %v502 = vadd.f32 0.0, %v501
        %v503 = vpop.f32.mrb[0].mxu0
        %504 = vmatprep.mubr.bf16.mxu0 0
        %505 = vmatmul.mubr.bf16.gmra.mrb[0].mxu0 %v439
        %v506 = vpop.f32.mrb[0].mxu0
        %v507 = vadd.f32 0.0, %v506
        %v508 = vpop.f32.mrb[0].mxu0
        %v509 = vpop.f32.mrb[0].mxu0
        %v510 = vadd.f32 0.0, %v509
        %v511 = vpop.f32.mrb[0].mxu0
        %512 = vmatprep.mubr.bf16.mxu0 0
        %513 = vmatmul.mubr.bf16.gmra.mrb[0].mxu0 %v442
        %v514 = vpop.f32.mrb[0].mxu0
        %v515 = vadd.f32 0.0, %v514
        %v516 = vpop.f32.mrb[0].mxu0
        %v517 = vpop.f32.mrb[0].mxu0
        %v518 = vadd.f32 0.0, %v517
        %v519 = vpop.f32.mrb[0].mxu0
        %520 = vmatprep.mubr.bf16.mxu0 0
        %521 = vmatmul.mubr.bf16.gmra.mrb[0].mxu0 %v445
        %v522 = vpop.f32.mrb[0].mxu0
        %v523 = vadd.f32 0.0, %v522
        %v524 = vpop.f32.mrb[0].mxu0
        %v525 = vpop.f32.mrb[0].mxu0
        %v526 = vadd.f32 0.0, %v525
        %v527 = vpop.f32.mrb[0].mxu0
        %528 = vmatprep.mubr.bf16.mxu0 0
        %529 = vmatmul.mubr.bf16.gmra.mrb[0].mxu0 %v448
        %v530 = vpop.f32.mrb[0].mxu0
        %v531 = vadd.f32 0.0, %v530
        %v532 = vpop.f32.mrb[0].mxu0
        %v533 = vpop.f32.mrb[0].mxu0
        %v534 = vadd.f32 0.0, %v533
        %v535 = vpop.f32.mrb[0].mxu0
        %536 = vmatprep.mubr.bf16.mxu0 0
        %537 = vmatmul.mubr.bf16.gmra.mrb[0].mxu0 %v451
        %v538 = vpop.f32.mrb[0].mxu0
        %v539 = vadd.f32 0.0, %v538
        %v540 = vpop.f32.mrb[0].mxu0
        %v541 = vpop.f32.mrb[0].mxu0
        %v542 = vadd.f32 0.0, %v541
        %v543 = vpop.f32.mrb[0].mxu0
        %544 = vmatprep.mubr.bf16.mxu0 0
        %545 = vmatmul.mubr.bf16.gmra.mrb[0].mxu0 %v454
        %v546 = vpop.f32.mrb[0].mxu0
        %v547 = vadd.f32 0.0, %v546
        %v548 = vpop.f32.mrb[0].mxu0
        %v549 = vpop.f32.mrb[0].mxu0
        %v550 = vadd.f32 0.0, %v549
        %v551 = vpop.f32.mrb[0].mxu0
        %552 = vdwg.mxu0
        %v553 = vld [vmem:[%s2] sm:$0x1]
        %v555 = vlaneseq
        %v556 = vshrl.u32 %v555, 7
        %v557 = vsub.s32 0, %v556
        %v558 = vrot.slane %v553, %v557
        %v560 = vadd.f32 %v491, %v558
        %v561 = vadd.f32 %v494, %v558
        %v562 = vadd.f32 %v499, %v558
        %v563 = vadd.f32 %v502, %v558
        %v564 = vadd.f32 %v507, %v558
        %v565 = vadd.f32 %v510, %v558
        %v566 = vadd.f32 %v515, %v558
        %v567 = vadd.f32 %v518, %v558
        %v568 = vadd.f32 %v523, %v558
        %v569 = vadd.f32 %v526, %v558
        %v570 = vadd.f32 %v531, %v558
        %v571 = vadd.f32 %v534, %v558
        %v572 = vadd.f32 %v539, %v558
        %v573 = vadd.f32 %v542, %v558
        %v574 = vadd.f32 %v547, %v558
        %v575 = vadd.f32 %v550, %v558
        %v576 = vmul.f32 %v560, %v560
        %v577 = vmul.f32 %v561, %v561
        %v578 = vmul.f32 %v562, %v562
        %v579 = vmul.f32 %v563, %v563
        %v580 = vmul.f32 %v564, %v564
        %v581 = vmul.f32 %v565, %v565
        %v582 = vmul.f32 %v566, %v566
        %v583 = vmul.f32 %v567, %v567
        %v584 = vmul.f32 %v568, %v568
        %v585 = vmul.f32 %v569, %v569
        %v586 = vmul.f32 %v570, %v570
        %v587 = vmul.f32 %v571, %v571
        %v588 = vmul.f32 %v572, %v572
        %v589 = vmul.f32 %v573, %v573
        %v590 = vmul.f32 %v574, %v574
        %v591 = vmul.f32 %v575, %v575
        %592 = vadd.xlane.f32.xlu0 %v576
        %v593 = vpop.xlane.xlu0 %592
        %594 = vadd.xlane.f32.xlu0 %v577
        %v595 = vpop.xlane.xlu0 %594
        %596 = vadd.xlane.f32.xlu0 %v578
        %v597 = vpop.xlane.xlu0 %596
        %598 = vadd.xlane.f32.xlu0 %v579
        %v599 = vpop.xlane.xlu0 %598
        %600 = vadd.xlane.f32.xlu0 %v580
        %v601 = vpop.xlane.xlu0 %600
        %602 = vadd.xlane.f32.xlu0 %v581
        %v603 = vpop.xlane.xlu0 %602
        %604 = vadd.xlane.f32.xlu0 %v582
        %v605 = vpop.xlane.xlu0 %604
        %606 = vadd.xlane.f32.xlu0 %v583
        %v607 = vpop.xlane.xlu0 %606
        %608 = vadd.xlane.f32.xlu0 %v584
        %v609 = vpop.xlane.xlu0 %608
        %610 = vadd.xlane.f32.xlu0 %v585
        %v611 = vpop.xlane.xlu0 %610
        %612 = vadd.xlane.f32.xlu0 %v586
        %v613 = vpop.xlane.xlu0 %612
        %614 = vadd.xlane.f32.xlu0 %v587
        %v615 = vpop.xlane.xlu0 %614
        %616 = vadd.xlane.f32.xlu0 %v588
        %v617 = vpop.xlane.xlu0 %616
        %618 = vadd.xlane.f32.xlu0 %v589
        %v619 = vpop.xlane.xlu0 %618
        %620 = vadd.xlane.f32.xlu0 %v590
        %v621 = vpop.xlane.xlu0 %620
        %622 = vadd.xlane.f32.xlu0 %v591
        %v623 = vpop.xlane.xlu0 %622
        %v624 = vmax.f32 %v593, 1e-24
        %v625 = vmax.f32 %v595, 1e-24
        %v626 = vmax.f32 %v597, 1e-24
        %v627 = vmax.f32 %v599, 1e-24
        %v628 = vmax.f32 %v601, 1e-24
        %v629 = vmax.f32 %v603, 1e-24
        %v630 = vmax.f32 %v605, 1e-24
        %v631 = vmax.f32 %v607, 1e-24
        %v632 = vmax.f32 %v609, 1e-24
        %v633 = vmax.f32 %v611, 1e-24
        %v634 = vmax.f32 %v613, 1e-24
        %v635 = vmax.f32 %v615, 1e-24
        %v636 = vmax.f32 %v617, 1e-24
        %v637 = vmax.f32 %v619, 1e-24
        %v638 = vmax.f32 %v621, 1e-24
        %v639 = vmax.f32 %v623, 1e-24
        %v640 = vrsqrt.pop %v624
        %v641 = vrsqrt.pop %v625
        %v642 = vrsqrt.pop %v626
        %v643 = vrsqrt.pop %v627
        %v644 = vrsqrt.pop %v628
        %v645 = vrsqrt.pop %v629
        %v646 = vrsqrt.pop %v630
        %v647 = vrsqrt.pop %v631
        %v648 = vrsqrt.pop %v632
        %v649 = vrsqrt.pop %v633
        %v650 = vrsqrt.pop %v634
        %v651 = vrsqrt.pop %v635
        %v652 = vrsqrt.pop %v636
        %v653 = vrsqrt.pop %v637
        %v654 = vrsqrt.pop %v638
        %v655 = vrsqrt.pop %v639
        %v656 = vmul.f32 %v560, %v640
        %v657 = vmul.f32 %v561, %v641
        %v658 = vmul.f32 %v562, %v642
        %v659 = vmul.f32 %v563, %v643
        %v660 = vmul.f32 %v564, %v644
        %v661 = vmul.f32 %v565, %v645
        %v662 = vmul.f32 %v566, %v646
        %v663 = vmul.f32 %v567, %v647
        %v664 = vmul.f32 %v568, %v648
        %v665 = vmul.f32 %v569, %v649
        %v666 = vmul.f32 %v570, %v650
        %v667 = vmul.f32 %v571, %v651
        %v668 = vmul.f32 %v572, %v652
        %v669 = vmul.f32 %v573, %v653
        %v670 = vmul.f32 %v574, %v654
        %v671 = vmul.f32 %v575, %v655
        %v672 = vld [vmem:[%s3] sm:$0x1]
        %v674 = vlaneseq
        %v675 = vshrl.u32 %v674, 7
        %v676 = vsub.s32 0, %v675
        %v677 = vrot.slane %v672, %v676
        %v679 = vmul.f32 %v656, %v677
        %v680 = vmul.f32 %v657, %v677
        %v681 = vmul.f32 %v658, %v677
        %v682 = vmul.f32 %v659, %v677
        %v683 = vmul.f32 %v660, %v677
        %v684 = vmul.f32 %v661, %v677
        %v685 = vmul.f32 %v662, %v677
        %v686 = vmul.f32 %v663, %v677
        %v687 = vmul.f32 %v664, %v677
        %v688 = vmul.f32 %v665, %v677
        %v689 = vmul.f32 %v666, %v677
        %v690 = vmul.f32 %v667, %v677
        %v691 = vmul.f32 %v668, %v677
        %v692 = vmul.f32 %v669, %v677
        %v693 = vmul.f32 %v670, %v677
        %v694 = vmul.f32 %v671, %v677
        %v695 = vld [vmem:[%s318] sm:$0x1]
        %v696 = vld [vmem:[%s318 + $0x1] sm:$0x1]
        %v699 = vlaneseq
        %v700 = vshrl.u32 %v699, 7
        %v701 = vsub.s32 0, %v700
        %v702 = vrot.slane %v695, %v701
        %v703 = vlaneseq
        %v704 = vshrl.u32 %v703, 7
        %v705 = vsub.s32 0, %v704
        %v706 = vrot.slane %v696, %v705
        %v709 = vmul.f32 %v679, %v702
        %v710 = vmul.f32 %v680, %v702
        %v711 = vmul.f32 %v681, %v702
        %v712 = vmul.f32 %v682, %v702
        %v713 = vmul.f32 %v683, %v702
        %v714 = vmul.f32 %v684, %v702
        %v715 = vmul.f32 %v685, %v702
        %v716 = vmul.f32 %v686, %v702
        %v717 = vmul.f32 %v687, %v706
        %v718 = vmul.f32 %v688, %v706
        %v719 = vmul.f32 %v689, %v706
        %v720 = vmul.f32 %v690, %v706
        %v721 = vmul.f32 %v691, %v706
        %v722 = vmul.f32 %v692, %v706
        %v723 = vmul.f32 %v693, %v706
        %v724 = vmul.f32 %v694, %v706
        %v725 = vld [vmem:[%s323] sm:$0x1]
        %v726 = vld [vmem:[%s323 + $0x1] sm:$0x1]
        %v729 = vlaneseq
        %v730 = vshrl.u32 %v729, 7
        %v731 = vsub.s32 0, %v730
        %v732 = vrot.slane %v725, %v731
        %v733 = vlaneseq
        %v734 = vshrl.u32 %v733, 7
        %v735 = vsub.s32 0, %v734
        %v736 = vrot.slane %v726, %v735
        %v739 = vadd.f32 %v709, %v732
        %v740 = vadd.f32 %v710, %v732
        %v741 = vadd.f32 %v711, %v732
        %v742 = vadd.f32 %v712, %v732
        %v743 = vadd.f32 %v713, %v732
        %v744 = vadd.f32 %v714, %v732
        %v745 = vadd.f32 %v715, %v732
        %v746 = vadd.f32 %v716, %v732
        %v747 = vadd.f32 %v717, %v736
        %v748 = vadd.f32 %v718, %v736
        %v749 = vadd.f32 %v719, %v736
        %v750 = vadd.f32 %v720, %v736
        %v751 = vadd.f32 %v721, %v736
        %v752 = vadd.f32 %v722, %v736
        %v753 = vadd.f32 %v723, %v736
        %v754 = vadd.f32 %v724, %v736
        %v755 = vxor.u32 %v739, 2147483648
        %v756 = vxor.u32 %v740, 2147483648
        %v757 = vxor.u32 %v741, 2147483648
        %v758 = vxor.u32 %v742, 2147483648
        %v759 = vxor.u32 %v743, 2147483648
        %v760 = vxor.u32 %v744, 2147483648
        %v761 = vxor.u32 %v745, 2147483648
        %v762 = vxor.u32 %v746, 2147483648
        %v763 = vxor.u32 %v747, 2147483648
        %v764 = vxor.u32 %v748, 2147483648
        %v765 = vxor.u32 %v749, 2147483648
        %v766 = vxor.u32 %v750, 2147483648
        %v767 = vxor.u32 %v751, 2147483648
        %v768 = vxor.u32 %v752, 2147483648
        %v769 = vxor.u32 %v753, 2147483648
        %v770 = vxor.u32 %v754, 2147483648
        %v771 = vmul.f32 %v755, 1.442695
        %v772 = vpow.pop %v771
        %v773 = vmul.f32 %v756, 1.442695
        %v774 = vpow.pop %v773
        %v775 = vmul.f32 %v757, 1.442695
        %v776 = vpow.pop %v775
        %v777 = vmul.f32 %v758, 1.442695
        %v778 = vpow.pop %v777
        %v779 = vmul.f32 %v759, 1.442695
        %v780 = vpow.pop %v779
        %v781 = vmul.f32 %v760, 1.442695
        %v782 = vpow.pop %v781
        %v783 = vmul.f32 %v761, 1.442695
        %v784 = vpow.pop %v783
        %v785 = vmul.f32 %v762, 1.442695
        %v786 = vpow.pop %v785
        %v787 = vmul.f32 %v763, 1.442695
        %v788 = vpow.pop %v787
        %v789 = vmul.f32 %v764, 1.442695
        %v790 = vpow.pop %v789
        %v791 = vmul.f32 %v765, 1.442695
        %v792 = vpow.pop %v791
        %v793 = vmul.f32 %v766, 1.442695
        %v794 = vpow.pop %v793
        %v795 = vmul.f32 %v767, 1.442695
        %v796 = vpow.pop %v795
        %v797 = vmul.f32 %v768, 1.442695
        %v798 = vpow.pop %v797
        %v799 = vmul.f32 %v769, 1.442695
        %v800 = vpow.pop %v799
        %v801 = vmul.f32 %v770, 1.442695
        %v802 = vpow.pop %v801
        %v803 = vadd.f32 %v772, 1.0
        %v804 = vadd.f32 %v774, 1.0
        %v805 = vadd.f32 %v776, 1.0
        %v806 = vadd.f32 %v778, 1.0
        %v807 = vadd.f32 %v780, 1.0
        %v808 = vadd.f32 %v782, 1.0
        %v809 = vadd.f32 %v784, 1.0
        %v810 = vadd.f32 %v786, 1.0
        %v811 = vadd.f32 %v788, 1.0
        %v812 = vadd.f32 %v790, 1.0
        %v813 = vadd.f32 %v792, 1.0
        %v814 = vadd.f32 %v794, 1.0
        %v815 = vadd.f32 %v796, 1.0
        %v816 = vadd.f32 %v798, 1.0
        %v817 = vadd.f32 %v800, 1.0
        %v818 = vadd.f32 %v802, 1.0
        %v819 = vrcp.pop %v803
        %v820 = vmul.f32 1.0, %v819
        %v821 = vrcp.pop %v804
        %v822 = vmul.f32 1.0, %v821
        %v823 = vrcp.pop %v805
        %v824 = vmul.f32 1.0, %v823
        %v825 = vrcp.pop %v806
        %v826 = vmul.f32 1.0, %v825
        %v827 = vrcp.pop %v807
        %v828 = vmul.f32 1.0, %v827
        %v829 = vrcp.pop %v808
        %v830 = vmul.f32 1.0, %v829
        %v831 = vrcp.pop %v809
        %v832 = vmul.f32 1.0, %v831
        %v833 = vrcp.pop %v810
        %v834 = vmul.f32 1.0, %v833
        %v835 = vrcp.pop %v811
        %v836 = vmul.f32 1.0, %v835
        %v837 = vrcp.pop %v812
        %v838 = vmul.f32 1.0, %v837
        %v839 = vrcp.pop %v813
        %v840 = vmul.f32 1.0, %v839
        %v841 = vrcp.pop %v814
        %v842 = vmul.f32 1.0, %v841
        %v843 = vrcp.pop %v815
        %v844 = vmul.f32 1.0, %v843
        %v845 = vrcp.pop %v816
        %v846 = vmul.f32 1.0, %v845
        %v847 = vrcp.pop %v817
        %v848 = vmul.f32 1.0, %v847
        %v849 = vrcp.pop %v818
        %v850 = vmul.f32 1.0, %v849
        %v851 = vmul.f32 %v739, %v820
        %v852 = vmul.f32 %v740, %v822
        %v853 = vmul.f32 %v741, %v824
        %v854 = vmul.f32 %v742, %v826
        %v855 = vmul.f32 %v743, %v828
        %v856 = vmul.f32 %v744, %v830
        %v857 = vmul.f32 %v745, %v832
        %v858 = vmul.f32 %v746, %v834
        %v859 = vmul.f32 %v747, %v836
        %v860 = vmul.f32 %v748, %v838
        %v861 = vmul.f32 %v749, %v840
        %v862 = vmul.f32 %v750, %v842
        %v863 = vmul.f32 %v751, %v844
        %v864 = vmul.f32 %v752, %v846
        %v865 = vmul.f32 %v753, %v848
        %v866 = vmul.f32 %v754, %v850
        %867 = vst [vmem:[%s313] sm:$0xff] %v851
        %868 = vst [vmem:[%s313 + $0x8] sm:$0xff] %v852
        %869 = vst [vmem:[%s313 + $0x10] sm:$0xff] %v853
        %870 = vst [vmem:[%s313 + $0x18] sm:$0xff] %v854
        %871 = vst [vmem:[%s313 + $0x20] sm:$0xff] %v855
        %872 = vst [vmem:[%s313 + $0x28] sm:$0xff] %v856
        %873 = vst [vmem:[%s313 + $0x30] sm:$0xff] %v857
        %874 = vst [vmem:[%s313 + $0x38] sm:$0xff] %v858
        %875 = vst [vmem:[%s313 + $0x40] sm:$0xff] %v859
        %876 = vst [vmem:[%s313 + $0x48] sm:$0xff] %v860
        %877 = vst [vmem:[%s313 + $0x50] sm:$0xff] %v861
        %878 = vst [vmem:[%s313 + $0x58] sm:$0xff] %v862
        %879 = vst [vmem:[%s313 + $0x60] sm:$0xff] %v863
        %880 = vst [vmem:[%s313 + $0x68] sm:$0xff] %v864
        %881 = vst [vmem:[%s313 + $0x70] sm:$0xff] %v865
        %882 = vst [vmem:[%s313 + $0x78] sm:$0xff] %v866
        %s883 = sand.u32 %s173, 1
        %s884 = scalar_lea.sflag [#allocation4], %s883
        %s885 = sand.u32 %s173, 1
        %s886 = smul.addr %s885, 128
        %s887 = scalar_lea.vmem [#allocation7], %s886
        // Predicated region
        $region53: #{tpu_custom_call.1} parent=43 // pred_check
          %p888 = pneg %p183
        $region54: #{tpu_custom_call.1} parent=43 // pred_check_branch
          %890 = sbr.rel (%p888) target = $region56
        $region55: #{tpu_custom_call.1} parent=43 // pred_region
          %s891 = smul.u32 2, %s24
          %s893 = ssub.s32 2048, 2048
          %894 = vsyncadd %s884, %s893
          %s895 = smul.addr %s891, 8
          %s896 = smul.addr %s895, 128
          %s897 = scalar_lea.hbm %s6, %s896
          %s898 = sshll.u32 %s887, 4
          %s899 = int_to_ptr.vmem [resolvable:$true] %s898
          %904 = dma.vmem_to_hbm [thread:$0]  %s899, 2048, %s897, %s884, 128, 128, 8
        $region56: #{tpu_custom_call.1} parent=43 // pred_fallthru
          _
      $region44: #{tpu_custom_call.1} parent=5 // pred_fallthru
        _
      %p905 = scmp.le.s32.totalorder 2, %s19
      // Predicated region
      $region57: #{tpu_custom_call.1} parent=5 // pred_check
        %p906 = pneg %p905
      $region58: #{tpu_custom_call.1} parent=5 // pred_check_branch
        %908 = sbr.rel (%p906) target = $region60
      $region59: #{tpu_custom_call.1} parent=5 // pred_region
        %s909 = ssub.s32 %s19, 2
        // Predicated region
        $region61: #{tpu_custom_call.1} parent=59 // pred_check
          %p910 = pneg %p189
        $region62: #{tpu_custom_call.1} parent=59 // pred_check_branch
          %912 = sbr.rel (%p910) target = $region64
        $region63: #{tpu_custom_call.1} parent=59 // pred_region
          %s913 = sand.u32 %s174, 1
          %s914 = scalar_lea.sflag [#allocation4], %s913
          %s915 = sand.u32 %s174, 1
          %s916 = smul.addr %s915, 128
          %s917 = scalar_lea.vmem [#allocation7], %s916
          %918 = dma.done %s914, 2048
        $region64: #{tpu_custom_call.1} parent=59 // pred_fallthru
          _
      $region60: #{tpu_custom_call.1} parent=5 // pred_fallthru
        _
    $region6: #{tpu_custom_call.1} parent=1 // loop_footer
      %s23 = sadd.s32 1, %s19
    $region7: #{tpu_custom_call.1} parent=1 // loop_footer_branch
      %18 = sbr.rel target = $region3
    $region8: #{tpu_custom_call.1} parent=1 // loop_exit
      _
    %919 = vsyncpa [#allocation3], 1
    %s920 = scalar_lea.sflag [#allocation3], 1
    %921 = vsyncpa %s920, 1
    %922 = vsyncpa [#allocation6], 1
    %923 = vsyncpa [#allocation4], 1
    %s924 = scalar_lea.sflag [#allocation4], 1
    %925 = vsyncpa %s924, 1

</llo_original>
